<compile_context>
chip_gen: v7x
topology: tpu7x:2x2x1
jax: 0.10.0
libtpu: 0.0.40
codegen_flags: <defaults>
</compile_context>

<pallas_src>
import functools

import jax
import jax.numpy as jnp
from jax.experimental import pallas as pl
from jax.experimental.pallas import tpu as pltpu

_LANE = 128
_MAX_TILE_LANES = 64 * 1024       # (8, 64K) f32 block = 2 MiB; ~8 MiB live (double buffered)
_FAST_PATH_MAX_ROWS = 2048        # below this, one fused XLA matmul beats kernel dispatch
_VMEM_LIMIT_BYTES = 32 * 1024 * 1024


@functools.lru_cache(maxsize=None)
def _roll_matches_jnp() -> bool:
    """True iff pltpu.roll(x, 1, axis)[j] == x[j-1] (same convention as jnp.roll)."""

    def probe(x_ref, o_ref):
        o_ref[...] = pltpu.roll(x_ref[...], shift=1, axis=1)

    x = jnp.tile(jnp.arange(128, dtype=jnp.float32), (8, 1))
    out = pl.pallas_call(probe, out_shape=jax.ShapeDtypeStruct((8, 128), jnp.float32))(x)
    v = float(out[0, 1])
    if v == 0.0:
        return True           # out[j] = x[j-1]
    if v == 2.0:
        return False          # out[j] = x[j+1]
    raise RuntimeError(f"unexpected pltpu.roll semantics (probe read {v})")


def _folded_pair_kernel(c_ref, x_ref, o_ref, *, roll_like_jnp):
    """Apply the folded 2x2 weight to (x0, x1) pairs interleaved along lanes.

    c_ref: SMEM (4,) f32     folded weight Wc = W1 @ W0, row-major [a, b, c, d]
    x_ref: VMEM (8, TB) f32  flat row-major view of x; even lanes hold x0,
                             odd lanes hold x1 of each feature pair
    o_ref: VMEM (8, TB) f32  same interleaved layout for (y0, y1)
    """
    a = c_ref[0]
    b = c_ref[1]
    c = c_ref[2]
    d = c_ref[3]

    x = x_ref[...]                          # (8, TB), fully dense f32
    tb = x.shape[-1]
    # Pair partner via XLU lane rotation (non-negative shifts only). Wrapped
    # lanes land on the opposite parity and are never selected below.
    if roll_like_jnp:
        x_next = pltpu.roll(x, shift=tb - 1, axis=1)   # [j] = x[j+1]
        x_prev = pltpu.roll(x, shift=1, axis=1)        # [j] = x[j-1]
    else:
        x_next = pltpu.roll(x, shift=1, axis=1)
        x_prev = pltpu.roll(x, shift=tb - 1, axis=1)

    lane = jax.lax.broadcasted_iota(jnp.int32, x.shape, dimension=1)
    is_even = (lane & 1) == 0

    y_even = a * x + b * x_next             # y0 = a*x0 + b*x1 (valid at even lanes)
    y_odd = c * x_prev + d * x              # y1 = c*x0 + d*x1 (valid at odd lanes)
    o_ref[...] = jnp.where(is_even, y_even, y_odd)


def _forward_pallas(x, coefs, *, max_tile_lanes=_MAX_TILE_LANES):
    """Per-pair 2x2 matvec of x (B, 2) with the folded weight `coefs` (4,)."""
    B = x.shape[0]
    n_flat = 2 * B

    # x's row-major storage already interleaves (x0, x1) along the minor axis,
    # so the flat view and the (8, W) view below are layout-free reshapes.
    x_flat = x.astype(jnp.float32).reshape(-1)

    # Pad the flat length to a multiple of 16 (8 sublane rows, even row width so
    # a feature pair never straddles a row) and to at least one (8, 128) tile.
    padded = max(-(-n_flat // 16) * 16, 8 * _LANE)
    if padded != n_flat:
        x_flat = jnp.pad(x_flat, (0, padded - n_flat))
    w = padded // 8                         # lanes per sublane row (always even)
    x2d = x_flat.reshape(8, w)

    tb = min(-(-w // _LANE) * _LANE, max_tile_lanes)   # lane-dense tile width
    grid = (pl.cdiv(w, tb),)                # last block lane-masked if tb doesn't divide w

    out2d = pl.pallas_call(
        functools.partial(_folded_pair_kernel, roll_like_jnp=_roll_matches_jnp()),
        out_shape=jax.ShapeDtypeStruct((8, w), jnp.float32),
        grid_spec=pltpu.PrefetchScalarGridSpec(
            num_scalar_prefetch=1,                          # coefs -> SMEM scalars
            grid=grid,
            in_specs=[pl.BlockSpec((8, tb), lambda i, _: (0, i))],
            out_specs=pl.BlockSpec((8, tb), lambda i, _: (0, i)),
        ),
        compiler_params=pltpu.CompilerParams(
            # TODO(synk): on v7x, gate pltpu.CORE_PARALLEL on this axis via
            # pltpu.get_tpu_info() to shard blocks across both TensorCores.
            dimension_semantics=("parallel",),
            vmem_limit_bytes=_VMEM_LIMIT_BYTES,
        ),
        cost_estimate=pl.CostEstimate(
            flops=6 * padded, transcendentals=0, bytes_accessed=2 * padded * 4 + 16),
    )(coefs, x2d)

    out_flat = out2d.reshape(-1)
    if padded != n_flat:
        out_flat = out_flat[:n_flat]
    return out_flat.reshape(B, 2)


def model_quant_forward(x, w0, w1, *, force_kernel=False):
    """Forward of ModelQuant: out = (x @ w0.T) @ w1.T.

    x: (B, 2); w0, w1: (2, 2) in PyTorch nn.Linear layout (out_features, in_features).
    """
    # Fold the two bias-free linear layers: out = x @ (w1 @ w0).T.
    wc = (w1 @ w0).astype(jnp.float32)                  # (2, 2), one tiny XLA matmul
    B = x.shape[0]
    if not force_kernel and B < _FAST_PATH_MAX_ROWS:
        # Small-batch fast path: kernel dispatch + pad would be pure overhead.
        return x.astype(jnp.float32) @ wc.T
    return _forward_pallas(x, wc.reshape(-1))


if __name__ == "__main__":
    key = jax.random.PRNGKey(0)
    k_x1, k_x2, k_x3, k_w0, k_w1 = jax.random.split(key, 5)

    w0 = jax.random.normal(k_w0, (2, 2), dtype=jnp.float32) * 0.5
    w1 = jax.random.normal(k_w1, (2, 2), dtype=jnp.float32) * 0.5

    def ref(xv):
        return (xv @ w0.T) @ w1.T

    # Small shapes consistent with CustomModel's Linear(2, 2) stack.
    x_small = jax.random.normal(k_x1, (8, 2), dtype=jnp.float32)       # tiny batch
    x_ragged = jax.random.normal(k_x2, (1003, 2), dtype=jnp.float32)   # pad + edge-masked block
    x_clean = jax.random.normal(k_x3, (4096, 2), dtype=jnp.float32)    # one full (8, 1024) block

    # Exercise the Pallas kernel on every case (force past the small-B bypass).
    for xv in (x_small, x_ragged, x_clean):
        out = model_quant_forward(xv, w0, w1, force_kernel=True)
        jax.block_until_ready(out)
        assert out.shape == (xv.shape[0], 2)
        assert jnp.allclose(out, ref(xv), atol=1e-5, rtol=1e-5)

    # Auto path: tiny batches bypass the kernel entirely (one fused XLA matmul).
    out_fast = model_quant_forward(x_small, w0, w1)
    jax.block_until_ready(out_fast)
    assert jnp.allclose(out_fast, ref(x_small), atol=1e-5, rtol=1e-5)

    # TODO(synk): ModelQuant.quantize() (torch.ao FX prepare/convert int8 graph
    # rewrite + observer calibration) is a graph transformation, not part of
    # forward(); not translated. Weight folding is only valid for the fp32 forward.
    print("KERNEL_OK")
</pallas_src>

<mosaic_0001>
module attributes {stable_mosaic.version = 11 : i64} {
  func.func @probe(%arg0: memref<8x128xf32, #tpu.memory_space<vmem>>, %arg1: memref<8x128xf32, #tpu.memory_space<vmem>>) attributes {dimension_semantics = [], scalar_prefetch = 0 : i64, scratch_operands = 0 : i64, tpu.core_type = #tpu.core_type<tc>} {
    %c0 = arith.constant 0 : index
    %c0_0 = arith.constant 0 : index
    %0 = vector.load %arg0[%c0, %c0_0] : memref<8x128xf32, #tpu.memory_space<vmem>>, vector<8x128xf32>
    %c1_i32 = arith.constant 1 : i32
    %1 = tpu.dynamic_rotate %0 by %c1_i32 dim 1 : vector<8x128xf32>, i32 -> vector<8x128xf32>
    %c0_1 = arith.constant 0 : index
    %c0_2 = arith.constant 0 : index
    %2 = vector.load %arg1[%c0_1, %c0_2] : memref<8x128xf32, #tpu.memory_space<vmem>>, vector<8x128xf32>
    tpu.vector_store %arg1[%c0_1, %c0_2], %1 {strides = array<i32>} : memref<8x128xf32, #tpu.memory_space<vmem>>, vector<8x128xf32>,
    return
  }
}

</mosaic_0001>

<llo_original>
// kernel: tpu_custom_call.1
$region0: #{tpu_custom_call.1}
  #allocation0 [shape = 'u32[]', space=smem, size = 0x4, offset = 0x4, fixed_abs, tag = 'smem constant byte address 0x4 - core index']
  #allocation1 [shape = 'u32[144,128]{1,0:T(1,128)}', space=vmem, size = 0x12000, scoped, tag = 'internal scratch']
  %s0 = inlined_call_operand.hbm [shape: f32[8,128], index: 0, kind: input, shape index: {}]
  %s1 = inlined_call_operand.hbm [shape: f32[8,128], index: 1, kind: output, shape index: {}]
  %s2 = sld [smem:[#allocation0]]
  $region18: #{tpu_custom_call.1} parent=0
    _
  %s4 = ssub.s32 1, %s2
  %s5 = scalar_select 0, %s4, %s2
  $region1: #{tpu_custom_call.1} parent=0
    #allocation2 [shape = 'u8[4096]{0}', space=vmem, size = 0x1000, scoped, tag = 'input window, operand 0, single buffered']
    #allocation3 [shape = 's32[1]{0}', space=sflag, size = 0x4, scoped, tag = 'scoped memory for tpu_custom_call.1']
    #allocation4 [shape = 's32[1]{0}', space=sflag, size = 0x4, scoped, tag = 'scoped memory for tpu_custom_call.1']
    #allocation5 [shape = 'u8[4096]{0}', space=vmem, size = 0x1000, scoped, tag = 'output window, operand 0, single buffered']
    %6 = vsyncpa [#allocation3], 0
    %7 = vsyncpa [#allocation4], 0
    // Predicated region
    $region2: #{tpu_custom_call.1} parent=1 // pred_check
      _
    $region3: #{tpu_custom_call.1} parent=1 // pred_check_branch
      %9 = sbr.rel (0) target = $region5
    $region4: #{tpu_custom_call.1} parent=1 // pred_region
      %s11 = ssub.s32 128, 128
      %12 = vsyncadd [#allocation3], %s11
      %s14 = sshll.u32 [#allocation2], 4
      %s15 = int_to_ptr.vmem [resolvable:$true] %s14
      %17 = dma.hbm_to_vmem [thread:$0]  %s0, 128, %s15, [#allocation3]
    $region5: #{tpu_custom_call.1} parent=1 // pred_fallthru
      _
    // Predicated region
    $region6: #{tpu_custom_call.1} parent=1 // pred_check
      _
    $region7: #{tpu_custom_call.1} parent=1 // pred_check_branch
      %19 = sbr.rel (0) target = $region9
    $region8: #{tpu_custom_call.1} parent=1 // pred_region
      %20 = dma.done [#allocation3], 128
    $region9: #{tpu_custom_call.1} parent=1 // pred_fallthru
      _
    %v21 = vld [vmem:[#allocation2] sm:$0xff]
    %22 = vrot.lane.b32.xlu0 %v21, 1
    %v23 = vpop.permute.xlu0 %22
    %24 = vst [vmem:[#allocation5] sm:$0xff] %v23
    // Predicated region
    $region10: #{tpu_custom_call.1} parent=1 // pred_check
      _
    $region11: #{tpu_custom_call.1} parent=1 // pred_check_branch
      %26 = sbr.rel (0) target = $region13
    $region12: #{tpu_custom_call.1} parent=1 // pred_region
      %s28 = ssub.s32 128, 128
      %29 = vsyncadd [#allocation4], %s28
      %s31 = sshll.u32 [#allocation5], 4
      %s32 = int_to_ptr.vmem [resolvable:$true] %s31
      %34 = dma.vmem_to_hbm [thread:$0]  %s32, 128, %s1, [#allocation4]
    $region13: #{tpu_custom_call.1} parent=1 // pred_fallthru
      _
    // Predicated region
    $region14: #{tpu_custom_call.1} parent=1 // pred_check
      _
    $region15: #{tpu_custom_call.1} parent=1 // pred_check_branch
      %36 = sbr.rel (0) target = $region17
    $region16: #{tpu_custom_call.1} parent=1 // pred_region
      %37 = dma.done [#allocation4], 128
    $region17: #{tpu_custom_call.1} parent=1 // pred_fallthru
      _
    %38 = vsyncpa [#allocation3], 1
    %39 = vsyncpa [#allocation4], 1

</llo_original>
